<compile_context>
chip_gen: v7x
topology: tpu7x:2x2x1
jax: 0.10.0
libtpu: 0.0.40
codegen_flags: <defaults>
</compile_context>

<pallas_src>
import functools

import jax
import jax.numpy as jnp
from jax import lax
from jax.experimental import pallas as pl
from jax.experimental.pallas import tpu as pltpu


def _cdiv(a, b):
    return -(-a // b)


def _sublane_group(itemsize):
    # native sublane packing: f32 -> 8 rows, bf16 -> 16, int8/fp8 -> 32
    return max(8, 32 // int(itemsize))


def _tpu_params():
    """(physical VMEM bytes per TensorCore, default partition count)."""
    vmem_bytes = None
    try:
        info = pltpu.get_tpu_info()
        cap = getattr(info, "vmem_capacity_bytes", None)
        if cap:
            vmem_bytes = int(cap)
    except Exception:
        vmem_bytes = None
    kind = ""
    try:
        kind = jax.devices()[0].device_kind.lower()
    except Exception:
        pass
    is_v7 = ("v7" in kind) or ("7x" in kind)
    if vmem_bytes is None:
        vmem_bytes = (64 if is_v7 else 128) * 1024 * 1024
    if is_v7:
        vmem_bytes = min(vmem_bytes, 64 * 1024 * 1024)
    # v5e / v6e expose a single TensorCore per chip; v7x has two.
    num_partitions = 2 if is_v7 else 1
    return vmem_bytes, num_partitions


def _choose_block_v(vocab):
    """Vocab tile width: full V for small vocabularies, otherwise a lane-dense
    multiple of 128 (prefer one that divides V so no column masking is needed)."""
    if vocab <= 2048:
        return vocab
    for bv in (1024, 896, 768, 640, 512):
        if vocab % bv == 0:
            return bv
    return 512          # ragged last vocab tile -> masked in-kernel


def _choose_block_rows(rows, block_v, it_t, it_s, sub, budget_bytes):
    """Largest row tile (multiple of the sublane group) fitting the VMEM budget:
    double-buffered native-dtype inputs + per-row f32 carries + chunk temps."""
    bytes_per_row = 2 * (it_t + it_s) * block_v + 5 * 512   # 2-buf inputs + 5 carries
    overhead = 8 * sub * block_v * 4 + (1 << 20)            # chunk temporaries + slack
    br = max(budget_bytes - overhead, 0) // max(bytes_per_row, 1)
    br = max(sub, (int(br) // sub) * sub)
    br = min(br, 2048)
    rows_rounded = _cdiv(rows, sub) * sub
    return max(sub, min(br, rows_rounded))


def _kl_distill_kernel(t_ref, s_ref, out_ref,
                       tm_ref, tl_ref, nm_ref, sm_ref, sl_ref,
                       *, inv_temp, rows, vocab, sub, need_col_mask):
    """Streaming KL(teacher || student) with temperature scaling.

    Grid = (partitions, row_tiles, vocab_tiles).  Per-row online-softmax
    carries (teacher max / sum-exp, numerator, student max / sum-exp) live in
    (block_rows, 1) VMEM scratch and are finalized at the last vocab tile.
    """
    p = pl.program_id(0)
    r = pl.program_id(1)
    v = pl.program_id(2)
    n_r = pl.num_programs(1)
    n_v = pl.num_programs(2)

    block_rows, block_v = t_ref.shape

    # ---- init: per-partition output block and per-row streaming carries ----
    @pl.when(jnp.logical_and(r == 0, v == 0))
    def _():
        out_ref[...] = jnp.zeros(out_ref.shape, jnp.float32)

    @pl.when(v == 0)
    def _():
        neg_inf = jnp.full((block_rows, 1), -jnp.inf, jnp.float32)
        zeros = jnp.zeros((block_rows, 1), jnp.float32)
        tm_ref[...] = neg_inf
        sm_ref[...] = neg_inf
        tl_ref[...] = zeros
        sl_ref[...] = zeros
        nm_ref[...] = zeros

    # column-validity mask, only materialized when the last vocab tile is ragged
    if need_col_mask:
        col = v * block_v + lax.broadcasted_iota(jnp.int32, (sub, block_v), 1)
        col_ok = col < vocab
    else:
        col_ok = None

    # ---- streaming online-softmax update over (sub, block_v) row groups ----
    def body(g, carry):
        g0 = pl.multiple_of(g * sub, sub)
        rsl = pl.ds(g0, sub)
        # exactly one cast + one inv_temp multiply per tensor element
        t = t_ref[rsl, :].astype(jnp.float32) * inv_temp
        s = s_ref[rsl, :].astype(jnp.float32) * inv_temp
        if col_ok is not None:
            t = jnp.where(col_ok, t, -jnp.inf)
            s = jnp.where(col_ok, s, -jnp.inf)

        t_m_prev = tm_ref[rsl, :]
        s_m_prev = sm_ref[rsl, :]
        t_m = jnp.maximum(t_m_prev, jnp.max(t, axis=-1, keepdims=True))
        s_m = jnp.maximum(s_m_prev, jnp.max(s, axis=-1, keepdims=True))

        t_e = jnp.exp(t - t_m)
        s_e = jnp.exp(s - s_m)
        num_c = t_e * (t - s)
        if col_ok is not None:
            num_c = jnp.where(col_ok, num_c, 0.0)

        alpha = jnp.exp(t_m_prev - t_m)          # teacher rescale on max update
        beta = jnp.exp(s_m_prev - s_m)           # student rescale on max update
        tl_ref[rsl, :] = alpha * tl_ref[rsl, :] + jnp.sum(t_e, axis=-1, keepdims=True)
        sl_ref[rsl, :] = beta * sl_ref[rsl, :] + jnp.sum(s_e, axis=-1, keepdims=True)
        nm_ref[rsl, :] = alpha * nm_ref[rsl, :] + jnp.sum(num_c, axis=-1, keepdims=True)
        tm_ref[rsl, :] = t_m
        sm_ref[rsl, :] = s_m
        return carry

    lax.fori_loop(0, block_rows // sub, body, 0)

    # ---- finalize this row tile at the last vocab tile ----------------------
    @pl.when(v == n_v - 1)
    def _():
        t_l = tl_ref[...]
        s_l = sl_ref[...]
        # KL_row = sum_v p*(log p - log q)
        #        = num / t_l - (t_m + log t_l) + (s_m + log s_l)
        row_kl = (nm_ref[...] / t_l
                  - (tm_ref[...] + jnp.log(t_l))
                  + (sm_ref[...] + jnp.log(s_l)))
        # mask ragged tail rows and duplicated (clamped) row tiles
        row_start = (p * n_r + r) * block_rows
        row_idx = row_start + lax.broadcasted_iota(jnp.int32, (block_rows, 1), 0)
        row_kl = jnp.where(row_idx < rows, row_kl, 0.0)
        # accumulate into the lane-dense (8, 128) per-partition output block
        out_ref[...] += jnp.sum(row_kl)


def distillation_loss(teacher_logits, student_logits, temperature=2.0,
                      block_rows=None, block_v=None, num_partitions=None):
    """KL(softmax(teacher/T) || softmax(student/T)), reduction='batchmean'
    (divide by the leading batch dim, as F.kl_div does), scaled by T**2."""
    assert teacher_logits.shape == student_logits.shape
    batch_size = teacher_logits.shape[0]
    vocab = teacher_logits.shape[-1]

    # Native storage dtypes all the way into VMEM (no promotion, no padding copy).
    t2 = teacher_logits.reshape(-1, vocab)
    s2 = student_logits.reshape(-1, vocab)
    rows = t2.shape[0]
    it_t = jnp.dtype(t2.dtype).itemsize
    it_s = jnp.dtype(s2.dtype).itemsize
    sub = max(_sublane_group(it_t), _sublane_group(it_s))

    vmem_bytes, default_parts = _tpu_params()
    vmem_limit = (vmem_bytes * 3) // 4          # ~96 MiB on 128 MiB parts, ~48 MiB on v7x

    if block_v is None:
        block_v = _choose_block_v(vocab)
    if block_rows is None:
        block_rows = _choose_block_rows(rows, block_v, it_t, it_s, sub,
                                        budget_bytes=(vmem_limit * 3) // 5)
    assert block_rows % sub == 0 and block_rows >= sub

    n_row_blocks = _cdiv(rows, block_rows)
    if num_partitions is None:
        num_partitions = default_parts
    num_partitions = max(1, min(int(num_partitions), n_row_blocks))
    tiles_per_part = _cdiv(n_row_blocks, num_partitions)
    n_vocab_blocks = _cdiv(vocab, block_v)
    need_col_mask = (vocab % block_v) != 0

    kernel = functools.partial(
        _kl_distill_kernel,
        inv_temp=1.0 / float(temperature),
        rows=rows, vocab=vocab, sub=sub, need_col_mask=need_col_mask)

    last_block = n_row_blocks - 1

    def in_map(pi, ri, vi, _tpp=tiles_per_part, _last=last_block):
        # Clamp over-allocated row-tile slots (from partition rounding) onto
        # the last real block; the kernel masks their contribution to zero.
        return (jnp.minimum(pi * _tpp + ri, _last), vi)

    cost = pl.CostEstimate(
        flops=12 * rows * vocab,
        transcendentals=2 * rows * vocab,
        bytes_accessed=rows * vocab * (it_t + it_s) + num_partitions * 8 * 128 * 4)

    out = pl.pallas_call(
        kernel,
        out_shape=jax.ShapeDtypeStruct((num_partitions * 8, 128), jnp.float32),
        grid_spec=pltpu.PrefetchScalarGridSpec(
            num_scalar_prefetch=0,
            grid=(num_partitions, tiles_per_part, n_vocab_blocks),
            in_specs=[pl.BlockSpec((block_rows, block_v), in_map),
                      pl.BlockSpec((block_rows, block_v), in_map)],
            out_specs=pl.BlockSpec((8, 128), lambda pi, ri, vi: (pi, 0)),
            scratch_shapes=[pltpu.VMEM((block_rows, 1), jnp.float32)
                            for _ in range(5)],
        ),
        compiler_params=pltpu.CompilerParams(
            dimension_semantics=("parallel", "arbitrary", "arbitrary"),
            vmem_limit_bytes=int(vmem_limit),
        ),
        cost_estimate=cost,
    )(t2, s2)

    partials = out[0::8, 0]                                   # one scalar per partition
    scale = (float(temperature) ** 2) / float(batch_size)     # batchmean + T^2
    return jnp.sum(partials) * scale


def _reference_loss(teacher_logits, student_logits, temperature=2.0):
    tl = teacher_logits.astype(jnp.float32)
    sl = student_logits.astype(jnp.float32)
    p = jax.nn.softmax(tl / temperature, axis=-1)
    log_q = jax.nn.log_softmax(sl / temperature, axis=-1)
    log_p = jax.nn.log_softmax(tl / temperature, axis=-1)
    kl = jnp.sum(p * (log_p - log_q))
    return kl / teacher_logits.shape[0] * temperature ** 2


if __name__ == "__main__":
    B, S, V = 2, 8, 32
    key = jax.random.PRNGKey(0)
    k1, k2, k3, k4 = jax.random.split(key, 4)
    teacher = jax.random.normal(k1, (B, S, V), dtype=jnp.float32)
    student = jax.random.normal(k2, (B, S, V), dtype=jnp.float32)

    # f32 inputs
    loss = jax.block_until_ready(distillation_loss(teacher, student, temperature=2.0))
    ref = _reference_loss(teacher, student, temperature=2.0)
    assert jnp.allclose(loss, ref, rtol=1e-5, atol=1e-5), (loss, ref)

    # bf16 inputs stay bf16 in HBM (half the DMA bytes); compute is f32 on-chip.
    t_bf, s_bf = teacher.astype(jnp.bfloat16), student.astype(jnp.bfloat16)
    loss_bf16 = jax.block_until_ready(distillation_loss(t_bf, s_bf, temperature=2.0))
    ref_bf16 = _reference_loss(t_bf, s_bf, temperature=2.0)
    assert jnp.allclose(loss_bf16, ref_bf16, rtol=1e-4, atol=1e-4), (loss_bf16, ref_bf16)

    # mixed precision (f32 teacher, bf16 student): no wrapper-side promotion.
    loss_mix = jax.block_until_ready(distillation_loss(teacher, s_bf, temperature=2.0))
    ref_mix = _reference_loss(teacher, s_bf, temperature=2.0)
    assert jnp.allclose(loss_mix, ref_mix, rtol=1e-4, atol=1e-4), (loss_mix, ref_mix)

    # ragged rows + ragged vocab + multi-partition path: exercises vocab-axis
    # tiling, in-kernel row/column masking, and clamped duplicate row tiles.
    B2, S2, V2 = 2, 20, 2500
    t_big = jax.random.normal(k3, (B2, S2, V2), dtype=jnp.float32)
    s_big = jax.random.normal(k4, (B2, S2, V2), dtype=jnp.float32)
    loss_big = jax.block_until_ready(
        distillation_loss(t_big, s_big, temperature=2.0,
                          block_rows=16, num_partitions=2))
    ref_big = _reference_loss(t_big, s_big, temperature=2.0)
    assert jnp.allclose(loss_big, ref_big, rtol=1e-4, atol=1e-4), (loss_big, ref_big)

    print("KERNEL_OK")
</pallas_src>

<mosaic_0001>
module attributes {stable_mosaic.version = 11 : i64} {
  func.func @_kl_distill_kernel(%arg0: i32, %arg1: i32, %arg2: i32, %arg3: memref<16x32xf32, #tpu.memory_space<vmem>>, %arg4: memref<16x32xf32, #tpu.memory_space<vmem>>, %arg5: memref<8x128xf32, #tpu.memory_space<vmem>>, %arg6: memref<16x1xf32, #tpu.memory_space<vmem>>, %arg7: memref<16x1xf32, #tpu.memory_space<vmem>>, %arg8: memref<16x1xf32, #tpu.memory_space<vmem>>, %arg9: memref<16x1xf32, #tpu.memory_space<vmem>>, %arg10: memref<16x1xf32, #tpu.memory_space<vmem>>) attributes {dimension_semantics = [#tpu.dimension_semantics<parallel>, #tpu.dimension_semantics<arbitrary>, #tpu.dimension_semantics<arbitrary>], iteration_bounds = array<i64: 1, 1, 1>, scalar_prefetch = 0 : i64, scratch_operands = 5 : i64, tpu.core_type = #tpu.core_type<tc>, window_params = [{transform_indices = @transform_0, window_bounds = array<i64: 16, 32>}, {transform_indices = @transform_1, window_bounds = array<i64: 16, 32>}, {transform_indices = @transform_2, window_bounds = array<i64: 8, 128>}]} {
    %c0_i32 = arith.constant 0 : i32
    %0 = arith.cmpi eq, %arg1, %c0_i32 : i32
    %c0_i32_0 = arith.constant 0 : i32
    %1 = arith.cmpi eq, %arg2, %c0_i32_0 : i32
    %2 = arith.andi %0, %1 : i1
    %3 = arith.extui %2 : i1 to i32
    %c0_i32_1 = arith.constant 0 : i32
    %4 = arith.cmpi ne, %3, %c0_i32_1 : i32
    scf.if %4 {
      %cst = arith.constant 0.000000e+00 : f32
      %12 = vector.broadcast %cst : f32 to vector<8x128xf32>
      %c0 = arith.constant 0 : index
      %c0_8 = arith.constant 0 : index
      %13 = vector.load %arg5[%c0, %c0_8] : memref<8x128xf32, #tpu.memory_space<vmem>>, vector<8x128xf32>
      tpu.vector_store %arg5[%c0, %c0_8], %12 {strides = array<i32>} : memref<8x128xf32, #tpu.memory_space<vmem>>, vector<8x128xf32>,
    } else {
    }
    %c0_i32_2 = arith.constant 0 : i32
    %5 = arith.cmpi eq, %arg2, %c0_i32_2 : i32
    %6 = arith.extui %5 : i1 to i32
    %c0_i32_3 = arith.constant 0 : i32
    %7 = arith.cmpi ne, %6, %c0_i32_3 : i32
    scf.if %7 {
      %cst = arith.constant 0xFF800000 : f32
      %12 = vector.broadcast %cst : f32 to vector<16x1xf32>
      %cst_8 = arith.constant 0.000000e+00 : f32
      %13 = vector.broadcast %cst_8 : f32 to vector<16x1xf32>
      %c0 = arith.constant 0 : index
      %c0_9 = arith.constant 0 : index
      %14 = vector.load %arg6[%c0, %c0_9] : memref<16x1xf32, #tpu.memory_space<vmem>>, vector<16x1xf32>
      tpu.vector_store %arg6[%c0, %c0_9], %12 {strides = array<i32>} : memref<16x1xf32, #tpu.memory_space<vmem>>, vector<16x1xf32>,
      %c0_10 = arith.constant 0 : index
      %c0_11 = arith.constant 0 : index
      %15 = vector.load %arg9[%c0_10, %c0_11] : memref<16x1xf32, #tpu.memory_space<vmem>>, vector<16x1xf32>
      tpu.vector_store %arg9[%c0_10, %c0_11], %12 {strides = array<i32>} : memref<16x1xf32, #tpu.memory_space<vmem>>, vector<16x1xf32>,
      %c0_12 = arith.constant 0 : index
      %c0_13 = arith.constant 0 : index
      %16 = vector.load %arg7[%c0_12, %c0_13] : memref<16x1xf32, #tpu.memory_space<vmem>>, vector<16x1xf32>
      tpu.vector_store %arg7[%c0_12, %c0_13], %13 {strides = array<i32>} : memref<16x1xf32, #tpu.memory_space<vmem>>, vector<16x1xf32>,
      %c0_14 = arith.constant 0 : index
      %c0_15 = arith.constant 0 : index
      %17 = vector.load %arg10[%c0_14, %c0_15] : memref<16x1xf32, #tpu.memory_space<vmem>>, vector<16x1xf32>
      tpu.vector_store %arg10[%c0_14, %c0_15], %13 {strides = array<i32>} : memref<16x1xf32, #tpu.memory_space<vmem>>, vector<16x1xf32>,
      %c0_16 = arith.constant 0 : index
      %c0_17 = arith.constant 0 : index
      %18 = vector.load %arg8[%c0_16, %c0_17] : memref<16x1xf32, #tpu.memory_space<vmem>>, vector<16x1xf32>
      tpu.vector_store %arg8[%c0_16, %c0_17], %13 {strides = array<i32>} : memref<16x1xf32, #tpu.memory_space<vmem>>, vector<16x1xf32>,
    } else {
    }
    %c0_i32_4 = arith.constant 0 : i32
    %c2_i32 = arith.constant 2 : i32
    %8 = arith.addi %c0_i32_4, %c2_i32 : i32
    %c1_i32 = arith.constant 1 : i32
    scf.for %arg11 = %c0_i32_4 to %8 step %c1_i32  : i32 {
      %c8_i32 = arith.constant 8 : i32
      %12 = arith.muli %arg11, %c8_i32 : i32
      %13 = tpu.assume_multiple %12, 8 : i32
      %14 = arith.index_cast %13 : i32 to index
      %c0 = arith.constant 0 : index
      %15 = vector.load %arg3[%14, %c0] : memref<16x32xf32, #tpu.memory_space<vmem>>, vector<8x32xf32>
      %cst = arith.constant 5.000000e-01 : f32
      %16 = vector.broadcast %cst : f32 to vector<8x32xf32>
      %17 = arith.mulf %15, %16 : vector<8x32xf32>
      %18 = arith.index_cast %13 : i32 to index
      %c0_8 = arith.constant 0 : index
      %19 = vector.load %arg4[%18, %c0_8] : memref<16x32xf32, #tpu.memory_space<vmem>>, vector<8x32xf32>
      %cst_9 = arith.constant 5.000000e-01 : f32
      %20 = vector.broadcast %cst_9 : f32 to vector<8x32xf32>
      %21 = arith.mulf %19, %20 : vector<8x32xf32>
      %22 = arith.index_cast %13 : i32 to index
      %c0_10 = arith.constant 0 : index
      %23 = vector.load %arg6[%22, %c0_10] : memref<16x1xf32, #tpu.memory_space<vmem>>, vector<8x1xf32>
      %24 = arith.index_cast %13 : i32 to index
      %c0_11 = arith.constant 0 : index
      %25 = vector.load %arg9[%24, %c0_11] : memref<16x1xf32, #tpu.memory_space<vmem>>, vector<8x1xf32>
      %cst_12 = arith.constant dense<0xFF800000> : vector<8xf32>
      %26 = vector.multi_reduction <maximumf>, %17, %cst_12 [1] : vector<8x32xf32> to vector<8xf32>
      %27 = vector.shape_cast %26 : vector<8xf32> to vector<8x1xf32>
      %28 = arith.maximumf %23, %27 : vector<8x1xf32>
      %cst_13 = arith.constant dense<0xFF800000> : vector<8xf32>
      %29 = vector.multi_reduction <maximumf>, %21, %cst_13 [1] : vector<8x32xf32> to vector<8xf32>
      %30 = vector.shape_cast %29 : vector<8xf32> to vector<8x1xf32>
      %31 = arith.maximumf %25, %30 : vector<8x1xf32>
      %32 = vector.broadcast %28 : vector<8x1xf32> to vector<8x32xf32>
      %33 = arith.subf %17, %32 : vector<8x32xf32>
      %34 = math.exp %33 : vector<8x32xf32>
      %35 = vector.broadcast %31 : vector<8x1xf32> to vector<8x32xf32>
      %36 = arith.subf %21, %35 : vector<8x32xf32>
      %37 = math.exp %36 : vector<8x32xf32>
      %38 = arith.subf %17, %21 : vector<8x32xf32>
      %39 = arith.mulf %34, %38 : vector<8x32xf32>
      %40 = arith.subf %23, %28 : vector<8x1xf32>
      %41 = math.exp %40 : vector<8x1xf32>
      %42 = arith.subf %25, %31 : vector<8x1xf32>
      %43 = math.exp %42 : vector<8x1xf32>
      %44 = arith.index_cast %13 : i32 to index
      %c0_14 = arith.constant 0 : index
      %45 = vector.load %arg7[%44, %c0_14] : memref<16x1xf32, #tpu.memory_space<vmem>>, vector<8x1xf32>
      %46 = arith.mulf %41, %45 : vector<8x1xf32>
      %cst_15 = arith.constant dense<0.000000e+00> : vector<8xf32>
      %47 = vector.multi_reduction <add>, %34, %cst_15 [1] : vector<8x32xf32> to vector<8xf32>
      %48 = vector.shape_cast %47 : vector<8xf32> to vector<8x1xf32>
      %49 = arith.addf %46, %48 : vector<8x1xf32>
      %50 = arith.index_cast %13 : i32 to index
      %c0_16 = arith.constant 0 : index
      %51 = vector.load %arg7[%50, %c0_16] : memref<16x1xf32, #tpu.memory_space<vmem>>, vector<8x1xf32>
      tpu.vector_store %arg7[%50, %c0_16], %49 {strides = array<i32>} : memref<16x1xf32, #tpu.memory_space<vmem>>, vector<8x1xf32>,
      %52 = arith.index_cast %13 : i32 to index
      %c0_17 = arith.constant 0 : index
      %53 = vector.load %arg10[%52, %c0_17] : memref<16x1xf32, #tpu.memory_space<vmem>>, vector<8x1xf32>
      %54 = arith.mulf %43, %53 : vector<8x1xf32>
      %cst_18 = arith.constant dense<0.000000e+00> : vector<8xf32>
      %55 = vector.multi_reduction <add>, %37, %cst_18 [1] : vector<8x32xf32> to vector<8xf32>
      %56 = vector.shape_cast %55 : vector<8xf32> to vector<8x1xf32>
      %57 = arith.addf %54, %56 : vector<8x1xf32>
      %58 = arith.index_cast %13 : i32 to index
      %c0_19 = arith.constant 0 : index
      %59 = vector.load %arg10[%58, %c0_19] : memref<16x1xf32, #tpu.memory_space<vmem>>, vector<8x1xf32>
      tpu.vector_store %arg10[%58, %c0_19], %57 {strides = array<i32>} : memref<16x1xf32, #tpu.memory_space<vmem>>, vector<8x1xf32>,
      %60 = arith.index_cast %13 : i32 to index
      %c0_20 = arith.constant 0 : index
      %61 = vector.load %arg8[%60, %c0_20] : memref<16x1xf32, #tpu.memory_space<vmem>>, vector<8x1xf32>
      %62 = arith.mulf %41, %61 : vector<8x1xf32>
      %cst_21 = arith.constant dense<0.000000e+00> : vector<8xf32>
      %63 = vector.multi_reduction <add>, %39, %cst_21 [1] : vector<8x32xf32> to vector<8xf32>
      %64 = vector.shape_cast %63 : vector<8xf32> to vector<8x1xf32>
      %65 = arith.addf %62, %64 : vector<8x1xf32>
      %66 = arith.index_cast %13 : i32 to index
      %c0_22 = arith.constant 0 : index
      %67 = vector.load %arg8[%66, %c0_22] : memref<16x1xf32, #tpu.memory_space<vmem>>, vector<8x1xf32>
      tpu.vector_store %arg8[%66, %c0_22], %65 {strides = array<i32>} : memref<16x1xf32, #tpu.memory_space<vmem>>, vector<8x1xf32>,
      %68 = arith.index_cast %13 : i32 to index
      %c0_23 = arith.constant 0 : index
      %69 = vector.load %arg6[%68, %c0_23] : memref<16x1xf32, #tpu.memory_space<vmem>>, vector<8x1xf32>
      tpu.vector_store %arg6[%68, %c0_23], %28 {strides = array<i32>} : memref<16x1xf32, #tpu.memory_space<vmem>>, vector<8x1xf32>,
      %70 = arith.index_cast %13 : i32 to index
      %c0_24 = arith.constant 0 : index
      %71 = vector.load %arg9[%70, %c0_24] : memref<16x1xf32, #tpu.memory_space<vmem>>, vector<8x1xf32>
      tpu.vector_store %arg9[%70, %c0_24], %31 {strides = array<i32>} : memref<16x1xf32, #tpu.memory_space<vmem>>, vector<8x1xf32>,
    }
    %c2_i32_5 = arith.constant 2 : i32
    %c0_i32_6 = arith.constant 0 : i32
    %9 = arith.cmpi eq, %arg2, %c0_i32_6 : i32
    %10 = arith.extui %9 : i1 to i32
    %c0_i32_7 = arith.constant 0 : i32
    %11 = arith.cmpi ne, %10, %c0_i32_7 : i32
    scf.if %11 {
      %c0 = arith.constant 0 : index
      %c0_8 = arith.constant 0 : index
      %12 = vector.load %arg7[%c0, %c0_8] : memref<16x1xf32, #tpu.memory_space<vmem>>, vector<16x1xf32>
      %c0_9 = arith.constant 0 : index
      %c0_10 = arith.constant 0 : index
      %13 = vector.load %arg10[%c0_9, %c0_10] : memref<16x1xf32, #tpu.memory_space<vmem>>, vector<16x1xf32>
      %c0_11 = arith.constant 0 : index
      %c0_12 = arith.constant 0 : index
      %14 = vector.load %arg8[%c0_11, %c0_12] : memref<16x1xf32, #tpu.memory_space<vmem>>, vector<16x1xf32>
      %15 = arith.divf %14, %12 : vector<16x1xf32>
      %c0_13 = arith.constant 0 : index
      %c0_14 = arith.constant 0 : index
      %16 = vector.load %arg6[%c0_13, %c0_14] : memref<16x1xf32, #tpu.memory_space<vmem>>, vector<16x1xf32>
      %17 = math.log %12 : vector<16x1xf32>
      %18 = arith.addf %16, %17 : vector<16x1xf32>
      %19 = arith.subf %15, %18 : vector<16x1xf32>
      %c0_15 = arith.constant 0 : index
      %c0_16 = arith.constant 0 : index
      %20 = vector.load %arg9[%c0_15, %c0_16] : memref<16x1xf32, #tpu.memory_space<vmem>>, vector<16x1xf32>
      %21 = math.log %13 : vector<16x1xf32>
      %22 = arith.addf %20, %21 : vector<16x1xf32>
      %23 = arith.addf %19, %22 : vector<16x1xf32>
      %c1_i32_17 = arith.constant 1 : i32
      %24 = arith.muli %arg0, %c1_i32_17 : i32
      %25 = arith.addi %24, %arg1 : i32
      %c16_i32 = arith.constant 16 : i32
      %26 = arith.muli %25, %c16_i32 : i32
      %27 = tpu.iota {dimensions = array<i32: 0>} : vector<16x1xi32>
      %28 = vector.broadcast %26 : i32 to vector<16x1xi32>
      %29 = arith.addi %28, %27 : vector<16x1xi32>
      %c16_i32_18 = arith.constant 16 : i32
      %30 = vector.broadcast %c16_i32_18 : i32 to vector<16x1xi32>
      %31 = arith.cmpi slt, %29, %30 : vector<16x1xi32>
      %cst = arith.constant 0.000000e+00 : f32
      %32 = vector.broadcast %cst : f32 to vector<16x1xf32>
      %33 = arith.select %31, %23, %32 : vector<16x1xi1>, vector<16x1xf32>
      %c0_19 = arith.constant 0 : index
      %c0_20 = arith.constant 0 : index
      %34 = vector.load %arg5[%c0_19, %c0_20] : memref<8x128xf32, #tpu.memory_space<vmem>>, vector<8x128xf32>
      %35 = vector.shape_cast %33 : vector<16x1xf32> to vector<1x16x1xf32>
      %cst_21 = arith.constant dense<0.000000e+00> : vector<1xf32>
      %36 = vector.multi_reduction <add>, %35, %cst_21 [1, 2] : vector<1x16x1xf32> to vector<1xf32>
      %37 = vector.shape_cast %36 : vector<1xf32> to vector<1x1x1xf32>
      %38 = vector.extract %37[0, 0, 0] : f32 from vector<1x1x1xf32>
      %39 = vector.broadcast %38 : f32 to vector<8x128xf32>
      %40 = arith.addf %34, %39 : vector<8x128xf32>
      %c0_22 = arith.constant 0 : index
      %c0_23 = arith.constant 0 : index
      %41 = vector.load %arg5[%c0_22, %c0_23] : memref<8x128xf32, #tpu.memory_space<vmem>>, vector<8x128xf32>
      tpu.vector_store %arg5[%c0_22, %c0_23], %40 {strides = array<i32>} : memref<8x128xf32, #tpu.memory_space<vmem>>, vector<8x128xf32>,
    } else {
    }
    return
  }
  func.func @transform_0(%arg0: i32, %arg1: i32, %arg2: i32) -> (i32, i32) {
    %c1_i32 = arith.constant 1 : i32
    %0 = arith.muli %arg0, %c1_i32 : i32
    %1 = arith.addi %0, %arg1 : i32
    %c0_i32 = arith.constant 0 : i32
    %2 = arith.minsi %1, %c0_i32 : i32
    %c0_i32_0 = arith.constant 0 : i32
    return %2, %arg2 : i32, i32
  }
  func.func @transform_1(%arg0: i32, %arg1: i32, %arg2: i32) -> (i32, i32) {
    %c1_i32 = arith.constant 1 : i32
    %0 = arith.muli %arg0, %c1_i32 : i32
    %1 = arith.addi %0, %arg1 : i32
    %c0_i32 = arith.constant 0 : i32
    %2 = arith.minsi %1, %c0_i32 : i32
    %c0_i32_0 = arith.constant 0 : i32
    return %2, %arg2 : i32, i32
  }
  func.func @transform_2(%arg0: i32, %arg1: i32, %arg2: i32) -> (i32, i32) {
    %c0_i32 = arith.constant 0 : i32
    %c0_i32_0 = arith.constant 0 : i32
    return %arg0, %c0_i32 : i32, i32
  }
}

</mosaic_0001>

<llo_original>
// kernel: tpu_custom_call.1
$region0: #{tpu_custom_call.1}
  #allocation0 [shape = 'u32[]', space=smem, size = 0x4, offset = 0x4, fixed_abs, tag = 'smem constant byte address 0x4 - core index']
  #allocation1 [shape = 'u32[144,128]{1,0:T(1,128)}', space=vmem, size = 0x12000, scoped, tag = 'internal scratch']
  #allocation2 [shape = 'f32[16,1]{1,0:T(8,128)}', space=vmem, size = 0x2000, scoped, tag = 'scratch operand']
  #allocation3 [shape = 'f32[16,1]{1,0:T(8,128)}', space=vmem, size = 0x2000, scoped, tag = 'scratch operand']
  #allocation4 [shape = 'f32[16,1]{1,0:T(8,128)}', space=vmem, size = 0x2000, scoped, tag = 'scratch operand']
  #allocation5 [shape = 'f32[16,1]{1,0:T(8,128)}', space=vmem, size = 0x2000, scoped, tag = 'scratch operand']
  #allocation6 [shape = 'f32[16,1]{1,0:T(8,128)}', space=vmem, size = 0x2000, scoped, tag = 'scratch operand']
  %s0 = inlined_call_operand.hbm [shape: f32[16,32], index: 0, kind: input, shape index: {}]
  %s1 = inlined_call_operand.hbm [shape: f32[16,32], index: 1, kind: input, shape index: {}]
  %s2 = inlined_call_operand.hbm [shape: f32[8,128], index: 2, kind: output, shape index: {}]
  %s3 = sld [smem:[#allocation0]]
  $region45: #{tpu_custom_call.1} parent=0
    _
  %s5 = ssub.s32 1, %s3
  %s6 = scalar_select 0, %s5, %s3
  $region1: #{tpu_custom_call.1} parent=0
    #allocation7 [shape = 'u8[8192]{0}', space=vmem, size = 0x2000, scoped, tag = 'input window, operand 0, single buffered']
    #allocation8 [shape = 's32[1]{0}', space=sflag, size = 0x4, scoped, tag = 'scoped memory for tpu_custom_call.1']
    #allocation9 [shape = 's32[1]{0}', space=sflag, size = 0x4, scoped, tag = 'scoped memory for tpu_custom_call.1']
    #allocation10 [shape = 'u8[8192]{0}', space=vmem, size = 0x2000, scoped, tag = 'input window, operand 1, single buffered']
    #allocation11 [shape = 's32[1]{0}', space=sflag, size = 0x4, scoped, tag = 'scoped memory for tpu_custom_call.1']
    #allocation12 [shape = 'u8[4096]{0}', space=vmem, size = 0x1000, scoped, tag = 'output window, operand 0, single buffered']
    %7 = vsyncpa [#allocation8], 0
    %8 = vsyncpa [#allocation11], 0
    %9 = vsyncpa [#allocation9], 0
    // Predicated region
    $region2: #{tpu_custom_call.1} parent=1 // pred_check
      _
    $region3: #{tpu_custom_call.1} parent=1 // pred_check_branch
      %11 = sbr.rel (0) target = $region5
    $region4: #{tpu_custom_call.1} parent=1 // pred_region
      %s12 = sadd.s32 0, 0
      %p13 = scmp.lt.s32.totalorder %s12, 0
      %s14 = scalar_select %p13, %s12, 0
      %s15 = smul.u32 2, %s14
      %s17 = ssub.s32 256, 256
      %18 = vsyncadd [#allocation8], %s17
      %s19 = smul.addr %s15, 128
      %s20 = scalar_lea.hbm %s0, %s19
      %s21 = sshll.u32 [#allocation7], 4
      %s22 = int_to_ptr.vmem [resolvable:$true] %s21
      %27 = dma.hbm_to_vmem [thread:$0]  %s20, 256, %s22, [#allocation8], 128, 128, 8
    $region5: #{tpu_custom_call.1} parent=1 // pred_fallthru
      _
    // Predicated region
    $region6: #{tpu_custom_call.1} parent=1 // pred_check
      _
    $region7: #{tpu_custom_call.1} parent=1 // pred_check_branch
      %29 = sbr.rel (0) target = $region9
    $region8: #{tpu_custom_call.1} parent=1 // pred_region
      %s30 = sadd.s32 0, 0
      %p31 = scmp.lt.s32.totalorder %s30, 0
      %s32 = scalar_select %p31, %s30, 0
      %s33 = smul.u32 2, %s32
      %s35 = ssub.s32 256, 256
      %36 = vsyncadd [#allocation11], %s35
      %s37 = smul.addr %s33, 128
      %s38 = scalar_lea.hbm %s1, %s37
      %s39 = sshll.u32 [#allocation10], 4
      %s40 = int_to_ptr.vmem [resolvable:$true] %s39
      %45 = dma.hbm_to_vmem [thread:$0]  %s38, 256, %s40, [#allocation11], 128, 128, 8
    $region9: #{tpu_custom_call.1} parent=1 // pred_fallthru
      _
    // Predicated region
    $region10: #{tpu_custom_call.1} parent=1 // pred_check
      _
    $region11: #{tpu_custom_call.1} parent=1 // pred_check_branch
      %47 = sbr.rel (0) target = $region13
    $region12: #{tpu_custom_call.1} parent=1 // pred_region
      %48 = dma.done [#allocation8], 256
    $region13: #{tpu_custom_call.1} parent=1 // pred_fallthru
      _
    // Predicated region
    $region14: #{tpu_custom_call.1} parent=1 // pred_check
      _
    $region15: #{tpu_custom_call.1} parent=1 // pred_check_branch
      %50 = sbr.rel (0) target = $region17
    $region16: #{tpu_custom_call.1} parent=1 // pred_region
      %51 = dma.done [#allocation11], 256
    $region17: #{tpu_custom_call.1} parent=1 // pred_fallthru
      _
    %s52 = sadd.s32 0, 0
    %p53 = scmp.lt.s32.totalorder %s52, 0
    %s54 = scalar_select %p53, %s52, 0
    %s55 = smul.u32 2, %s54
    %s56 = sadd.s32 0, 0
    %p57 = scmp.lt.s32.totalorder %s56, 0
    %s58 = scalar_select %p57, %s56, 0
    %s59 = smul.u32 2, %s58
    %p60 = scmp.eq.s32.totalorder 0, 0
    %p61 = scmp.eq.s32.totalorder 0, 0
    %p62 = pnand %p60, %p61
    %p63 = pneg %p62
    // Predicated region
    $region18: #{tpu_custom_call.1} parent=1 // pred_check
      _
    $region19: #{tpu_custom_call.1} parent=1 // pred_check_branch
      %65 = sbr.rel (%p62) target = $region21
    $region20: #{tpu_custom_call.1} parent=1 // pred_region
      %66 = vst [vmem:[#allocation12] sm:$0xff] 0.0
    $region21: #{tpu_custom_call.1} parent=1 // pred_fallthru
      _
    // Predicated region
    $region22: #{tpu_custom_call.1} parent=1 // pred_check
      %p67 = pneg %p61
    $region23: #{tpu_custom_call.1} parent=1 // pred_check_branch
      %69 = sbr.rel (%p67) target = $region25
    $region24: #{tpu_custom_call.1} parent=1 // pred_region
      %vm70 = vcmask 7168
      %71 = vst.msk [vmem:[#allocation2] sm:$0xff] %vm70, -inf
      %72 = vst.msk [vmem:[#allocation2 + $0x8] sm:$0xff] %vm70, -inf
      %73 = vst.msk [vmem:[#allocation5] sm:$0xff] %vm70, -inf
      %74 = vst.msk [vmem:[#allocation5 + $0x8] sm:$0xff] %vm70, -inf
      %75 = vst.msk [vmem:[#allocation3] sm:$0xff] %vm70, 0.0
      %76 = vst.msk [vmem:[#allocation3 + $0x8] sm:$0xff] %vm70, 0.0
      %77 = vst.msk [vmem:[#allocation6] sm:$0xff] %vm70, 0.0
      %78 = vst.msk [vmem:[#allocation6 + $0x8] sm:$0xff] %vm70, 0.0
      %79 = vst.msk [vmem:[#allocation4] sm:$0xff] %vm70, 0.0
      %80 = vst.msk [vmem:[#allocation4 + $0x8] sm:$0xff] %vm70, 0.0
    $region25: #{tpu_custom_call.1} parent=1 // pred_fallthru
      _
    loop: start=0, step=1, limit=2
    $region26: #{tpu_custom_call.1} parent=1 // loop_pre_header
      _
    $region27: #{tpu_custom_call.1} parent=1 // loop_header
      %s82 = sphi 0, %s86
      %p83 = scmp.ge.s32.totalorder %s82, 2
    $region28: #{tpu_custom_call.1} parent=1 // loop_header_branch
      %85 = sbr.rel (%p83) target = $region32
    $region29: #{tpu_custom_call.1} parent=1 // loop_body
      %s87 = smul.u32 %s82, 8
      %s88 = scalar_lea.vmem [#allocation7], %s87
      %v89 = vld [vmem:[%s88] sm:$0xff]
      %v90 = vmul.f32 %v89, 0.5
      %s91 = scalar_lea.vmem [#allocation10], %s87
      %v92 = vld [vmem:[%s91] sm:$0xff]
      %v93 = vmul.f32 %v92, 0.5
      %s94 = scalar_lea.vmem [#allocation2], %s87
      %v95 = vld [vmem:[%s94] sm:$0xff]
      %s96 = scalar_lea.vmem [#allocation5], %s87
      %v97 = vld [vmem:[%s96] sm:$0xff]
      %vm98 = vcmask 261120
      %v99 = vsel %vm98, %v90, -inf
      %100 = vmax.xlane.f32.xlu0 %v99
      %v101 = vpop.xlane.xlu0 %100
      %v102 = vmax.f32 %v95, %v101
      %v103 = vsel %vm98, %v93, -inf
      %104 = vmax.xlane.f32.xlu0 %v103
      %v105 = vpop.xlane.xlu0 %104
      %v106 = vmax.f32 %v97, %v105
      %108 = vset.pattern.permute.xlu0 0
      %109 = vperm.xlu0 %108, %v102
      %v110 = vpop.permute.xlu0 %109
      %v112 = vsub.f32 %v90, %v110
      %v113 = vmul.f32 %v112, 1.442695
      %v114 = vpow.pop %v113
      %116 = vset.pattern.permute.xlu0 0
      %117 = vperm.xlu0 %116, %v106
      %v118 = vpop.permute.xlu0 %117
      %v120 = vsub.f32 %v93, %v118
      %v121 = vmul.f32 %v120, 1.442695
      %v122 = vpow.pop %v121
      %v123 = vsub.f32 %v90, %v93
      %v124 = vmul.f32 %v114, %v123
      %v125 = vsub.f32 %v95, %v102
      %v126 = vmul.f32 %v125, 1.442695
      %v127 = vpow.pop %v126
      %v128 = vsub.f32 %v97, %v106
      %v129 = vmul.f32 %v128, 1.442695
      %v130 = vpow.pop %v129
      %s131 = scalar_lea.vmem [#allocation3], %s87
      %v132 = vld [vmem:[%s131] sm:$0xff]
      %v133 = vmul.f32 %v127, %v132
      %v134 = vsel %vm98, %v114, 0.0
      %135 = vadd.xlane.f32.xlu0 %v134
      %v136 = vpop.xlane.xlu0 %135
      %v137 = vadd.f32 %v133, %v136
      %vm138 = vcmask 7168
      %139 = vst.msk [vmem:[%s131] sm:$0xff] %vm138, %v137
      %s140 = scalar_lea.vmem [#allocation6], %s87
      %v141 = vld [vmem:[%s140] sm:$0xff]
      %v142 = vmul.f32 %v130, %v141
      %v143 = vsel %vm98, %v122, 0.0
      %144 = vadd.xlane.f32.xlu0 %v143
      %v145 = vpop.xlane.xlu0 %144
      %v146 = vadd.f32 %v142, %v145
      %147 = vst.msk [vmem:[%s140] sm:$0xff] %vm138, %v146
      %s148 = scalar_lea.vmem [#allocation4], %s87
      %v149 = vld [vmem:[%s148] sm:$0xff]
      %v150 = vmul.f32 %v127, %v149
      %v151 = vsel %vm98, %v124, 0.0
      %152 = vadd.xlane.f32.xlu0 %v151
      %v153 = vpop.xlane.xlu0 %152
      %v154 = vadd.f32 %v150, %v153
      %155 = vst.msk [vmem:[%s148] sm:$0xff] %vm138, %v154
      %156 = vst.msk [vmem:[%s94] sm:$0xff] %vm138, %v102
      %157 = vst.msk [vmem:[%s96] sm:$0xff] %vm138, %v106
    $region30: #{tpu_custom_call.1} parent=1 // loop_footer
      %s86 = sadd.s32 1, %s82
    $region31: #{tpu_custom_call.1} parent=1 // loop_footer_branch
      %81 = sbr.rel target = $region27
    $region32: #{tpu_custom_call.1} parent=1 // loop_exit
      _
    // Predicated region
    $region33: #{tpu_custom_call.1} parent=1 // pred_check
      %p158 = pneg %p61
    $region34: #{tpu_custom_call.1} parent=1 // pred_check_branch
      %160 = sbr.rel (%p158) target = $region36
    $region35: #{tpu_custom_call.1} parent=1 // pred_region
      %v161 = vld [vmem:[#allocation3] sm:$0xff]
      %v162 = vld [vmem:[#allocation3 + $0x8] sm:$0xff]
      %v163 = vld [vmem:[#allocation6] sm:$0xff]
      %v164 = vld [vmem:[#allocation6 + $0x8] sm:$0xff]
      %v165 = vld [vmem:[#allocation4] sm:$0xff]
      %v166 = vld [vmem:[#allocation4 + $0x8] sm:$0xff]
      %v167 = vrcp.pop %v161
      %v168 = vmul.f32 %v165, %v167
      %v169 = vrcp.pop %v162
      %v170 = vmul.f32 %v166, %v169
      %v171 = vld [vmem:[#allocation2] sm:$0xff]
      %v172 = vld [vmem:[#allocation2 + $0x8] sm:$0xff]
      %v173 = vlog2.pop %v161
      %v174 = vmul.f32 %v173, 0.6931472
      %v175 = vlog2.pop %v162
      %v176 = vmul.f32 %v175, 0.6931472
      %v177 = vadd.f32 %v171, %v174
      %v178 = vadd.f32 %v172, %v176
      %v179 = vsub.f32 %v168, %v177
      %v180 = vsub.f32 %v170, %v178
      %v181 = vld [vmem:[#allocation5] sm:$0xff]
      %v182 = vld [vmem:[#allocation5 + $0x8] sm:$0xff]
      %v183 = vlog2.pop %v163
      %v184 = vmul.f32 %v183, 0.6931472
      %v185 = vlog2.pop %v164
      %v186 = vmul.f32 %v185, 0.6931472
      %v187 = vadd.f32 %v181, %v184
      %v188 = vadd.f32 %v182, %v186
      %v189 = vadd.f32 %v179, %v187
      %v190 = vadd.f32 %v180, %v188
      %s191 = sadd.s32 0, 0
      %s192 = smul.u32 %s191, 16
      %v193 = vlaneseq
      %v194 = vshrl.u32 %v193, 7
      %v195 = vadd.s32 %v194, 8
      %v196 = vstv %s192
      %v197 = vadd.s32 %v196, %v194
      %v198 = vadd.s32 %v196, %v195
      %vm199 = vcmp.lt.s32.totalorder %v197, 16
      %vm200 = vcmp.lt.s32.totalorder %v198, 16
      %v201 = vsel %vm199, %v189, 0.0
      %v202 = vsel %vm200, %v190, 0.0
      %v203 = vld [vmem:[#allocation12] sm:$0xff]
      %vm204 = vcmask 7168
      %v205 = vsel %vm204, %v201, 0.0
      %v206 = vsel %vm204, %v202, 0.0
      %v207 = vadd.f32 %v205, %v206
      %208 = vadd.xlane.f32.xlu0 %v207
      %v209 = vpop.xlane.xlu0 %208
      %v210 = vrot.slane %v209, 4
      %v211 = vadd.f32 %v209, %v210
      %v212 = vrot.slane %v211, 2
      %v213 = vadd.f32 %v211, %v212
      %v214 = vrot.slane %v213, 1
      %v215 = vadd.f32 %v213, %v214
      %s216 = vtos %v215
      %v217 = vstv %s216
      %v218 = vadd.f32 %v203, %v217
      %219 = vst [vmem:[#allocation12] sm:$0xff] %v218
    $region36: #{tpu_custom_call.1} parent=1 // pred_fallthru
      _
    // Predicated region
    $region37: #{tpu_custom_call.1} parent=1 // pred_check
      _
    $region38: #{tpu_custom_call.1} parent=1 // pred_check_branch
      %221 = sbr.rel (0) target = $region40
    $region39: #{tpu_custom_call.1} parent=1 // pred_region
      %s223 = ssub.s32 128, 128
      %224 = vsyncadd [#allocation9], %s223
      %s226 = sshll.u32 [#allocation12], 4
      %s227 = int_to_ptr.vmem [resolvable:$true] %s226
      %229 = dma.vmem_to_hbm [thread:$0]  %s227, 128, %s2, [#allocation9]
    $region40: #{tpu_custom_call.1} parent=1 // pred_fallthru
      _
    // Predicated region
    $region41: #{tpu_custom_call.1} parent=1 // pred_check
      _
    $region42: #{tpu_custom_call.1} parent=1 // pred_check_branch
      %231 = sbr.rel (0) target = $region44
    $region43: #{tpu_custom_call.1} parent=1 // pred_region
      %232 = dma.done [#allocation9], 128
    $region44: #{tpu_custom_call.1} parent=1 // pred_fallthru
      _
    %233 = vsyncpa [#allocation8], 1
    %234 = vsyncpa [#allocation11], 1
    %235 = vsyncpa [#allocation9], 1

</llo_original>
